<compile_context>
chip_gen: v5e
topology: v5e:2x2
jax: 0.10.0
libtpu: 0.0.40
codegen_flags: <defaults>
</compile_context>

<pallas_src>
import jax
import jax.numpy as jnp
from jax.experimental import pallas as pl
from jax.experimental.pallas import tpu as pltpu

HID = 256
IN_DIM = 4
OUT_DIM = 2
PAD_K_IN = 8      # zero-padded input feature dim (4 -> 8)
PAD_N_OUT = 8     # zero-padded logit dim (2 -> 8)
TILE_M = 256      # rollout batch tile: MXU height on v6e/v7x, 2x128 on v5e
MIN_TILE_M = 8    # minimal sublane-aligned tile for the single-step path
NEG_MASK = -1e30  # finite (not -inf) mask bias: exp underflows to exactly 0


def _round_up(n, m):
    return ((n + m - 1) // m) * m


def _reinforce_kernel(x_ref, w1_ref, b1_ref, w2_ref, b2_ref,
                      w3_ref, b3_ref, w4_ref, b4_ref, o_ref):
    # Layer 1: (tile_m, 8) @ (8, 256) + b -> ReLU  (f32; zero-padded K exact)
    h = jnp.dot(x_ref[...], w1_ref[...], preferred_element_type=jnp.float32)
    h = jnp.maximum(h + b1_ref[...], 0.0)

    # Layers 2 & 3: bf16 weights (dominant bytes), bf16 MXU inputs, f32 acc;
    # bias-add / ReLU stay f32.
    h = jnp.dot(h.astype(jnp.bfloat16), w2_ref[...],
                preferred_element_type=jnp.float32)
    h = jnp.maximum(h + b2_ref[...], 0.0)
    h = jnp.dot(h.astype(jnp.bfloat16), w3_ref[...],
                preferred_element_type=jnp.float32)
    h = jnp.maximum(h + b3_ref[...], 0.0)

    # Layer 4 logits: (tile_m, 256) @ (256, 8) + b. Padded lanes 2..7 have a
    # -1e30 bias baked into b4, so no iota/where masking is needed here.
    logits = (jnp.dot(h, w4_ref[...], preferred_element_type=jnp.float32)
              + b4_ref[...])

    # Row-wise softmax over the 2 real lanes (== Softmax(dim=0) of the
    # unpadded (2,) output); masked lanes underflow to exact 0 after exp.
    m = jnp.max(logits, axis=-1, keepdims=True)
    e = jnp.exp(logits - m)
    s = jnp.sum(e, axis=-1, keepdims=True)
    o_ref[...] = e / s


def prepare_params(params):
    """One-time parameter prep (pad small layers, bake softmax mask into b4,
    cast the two big hidden weights to bf16). Off the per-call hot path."""
    w1, b1, w2, b2, w3, b3, w4, b4 = params
    w1_pad = jnp.zeros((PAD_K_IN, HID), jnp.float32).at[:IN_DIM, :].set(w1)
    w4_pad = jnp.zeros((HID, PAD_N_OUT), jnp.float32).at[:, :OUT_DIM].set(w4)
    # Padded logit lanes get a large-negative (finite) bias so exp() in the
    # kernel's softmax underflows to exactly 0 -- no masking ops in the kernel.
    b4_pad = jnp.full((1, PAD_N_OUT), NEG_MASK, jnp.float32).at[0, :OUT_DIM].set(b4)
    return (w1_pad, b1.reshape(1, HID),
            w2.astype(jnp.bfloat16), b2.reshape(1, HID),
            w3.astype(jnp.bfloat16), b3.reshape(1, HID),
            w4_pad, b4_pad)


def _forward_padded(x_rows, padded_params, tile_m):
    """x_rows: (B_pad, PAD_K_IN) f32, B_pad % tile_m == 0.
    Grid over batch chunks; weights/biases pinned at block (0, 0) so they are
    DMA'd into VMEM once and stay resident across all grid steps."""
    b_pad = x_rows.shape[0]
    num_chunks = b_pad // tile_m

    def resident(arr):
        return pl.BlockSpec(arr.shape, lambda i: (0, 0))

    return pl.pallas_call(
        _reinforce_kernel,
        out_shape=jax.ShapeDtypeStruct((b_pad, PAD_N_OUT), jnp.float32),
        grid=(num_chunks,),
        in_specs=[pl.BlockSpec((tile_m, PAD_K_IN), lambda i: (i, 0))]
                 + [resident(p) for p in padded_params],
        out_specs=pl.BlockSpec((tile_m, PAD_N_OUT), lambda i: (i, 0)),
        compiler_params=pltpu.CompilerParams(
            dimension_semantics=("parallel",)),
    )(x_rows, *padded_params)


@jax.jit
def reinforce_forward(x, padded_params):
    """Single env step. x: (4,) f32 state -> (2,) action probabilities."""
    x_rows = jnp.zeros((MIN_TILE_M, PAD_K_IN), jnp.float32).at[0, :IN_DIM].set(x)
    return _forward_padded(x_rows, padded_params, MIN_TILE_M)[0, :OUT_DIM]


@jax.jit
def reinforce_forward_rollout(xs, padded_params):
    """Whole-rollout / batched forward. xs: (B, 4) for any B -> (B, 2).
    Pads B up to a multiple of the tile (no silent truncation) and runs one
    kernel launch with a grid over 256-row chunks (weights VMEM-resident)."""
    b = xs.shape[0]
    tile_m = TILE_M if b >= TILE_M else _round_up(max(b, 1), MIN_TILE_M)
    b_pad = _round_up(b, tile_m)
    x_rows = jnp.zeros((b_pad, PAD_K_IN), jnp.float32).at[:b, :IN_DIM].set(xs)
    return _forward_padded(x_rows, padded_params, tile_m)[:b, :OUT_DIM]


def init_params(key):
    """Deterministic PyTorch-nn.Linear-style init: U(-1/sqrt(fan_in), +)."""
    def linear(key, fan_in, fan_out):
        kw, kb = jax.random.split(key)
        bound = 1.0 / jnp.sqrt(fan_in)
        w = jax.random.uniform(kw, (fan_in, fan_out), jnp.float32, -bound, bound)
        b = jax.random.uniform(kb, (fan_out,), jnp.float32, -bound, bound)
        return w, b

    k1, k2, k3, k4 = jax.random.split(key, 4)
    w1, b1 = linear(k1, IN_DIM, HID)
    w2, b2 = linear(k2, HID, HID)
    w3, b3 = linear(k3, HID, HID)
    w4, b4 = linear(k4, HID, OUT_DIM)
    return (w1, b1, w2, b2, w3, b3, w4, b4)


def reinforce_ref_f32(x, params):
    """Pure-f32 JAX reference of the PyTorch forward (module semantics)."""
    w1, b1, w2, b2, w3, b3, w4, b4 = params
    h = jnp.maximum(x @ w1 + b1, 0.0)
    h = jnp.maximum(h @ w2 + b2, 0.0)
    h = jnp.maximum(h @ w3 + b3, 0.0)
    logits = h @ w4 + b4
    return jax.nn.softmax(logits, axis=0)


def reinforce_ref_bf16(x, params):
    """Reference matching the kernel's bf16-weight / f32-accumulate math."""
    w1, b1, w2, b2, w3, b3, w4, b4 = params
    w2b, w3b = w2.astype(jnp.bfloat16), w3.astype(jnp.bfloat16)
    h = jnp.maximum(jnp.dot(x, w1, preferred_element_type=jnp.float32) + b1, 0.0)
    h = jnp.maximum(jnp.dot(h.astype(jnp.bfloat16), w2b,
                            preferred_element_type=jnp.float32) + b2, 0.0)
    h = jnp.maximum(jnp.dot(h.astype(jnp.bfloat16), w3b,
                            preferred_element_type=jnp.float32) + b3, 0.0)
    logits = jnp.dot(h, w4, preferred_element_type=jnp.float32) + b4
    return jax.nn.softmax(logits, axis=0)


if __name__ == "__main__":
    key = jax.random.PRNGKey(0)
    kp, kx1, kx2 = jax.random.split(key, 3)
    params = init_params(kp)

    padded = prepare_params(params)          # one-time prep, off the hot path
    jax.block_until_ready(padded)

    # --- Single env-step forward (CartPole-style 4-dim state) ---
    x = jax.random.normal(kx1, (IN_DIM,), jnp.float32)
    probs = reinforce_forward(x, padded)
    jax.block_until_ready(probs)
    ref_matched = reinforce_ref_bf16(x, params)
    ref_f32 = reinforce_ref_f32(x, params)
    assert probs.shape == (OUT_DIM,)
    assert jnp.allclose(jnp.sum(probs), 1.0, atol=1e-5)
    assert jnp.allclose(probs, ref_matched, atol=1e-3), (probs, ref_matched)
    assert jnp.allclose(probs, ref_f32, atol=5e-2), (probs, ref_f32)

    # --- Rollout forward: 500 states -> padded to 512 = 2 x 256-row grid
    # --- steps; weights DMA'd to VMEM once and reused across all steps.
    B = 500
    xs = jax.random.normal(kx2, (B, IN_DIM), jnp.float32)
    probs_b = reinforce_forward_rollout(xs, padded)
    jax.block_until_ready(probs_b)
    ref_b = jax.vmap(lambda xi: reinforce_ref_bf16(xi, params))(xs)
    assert probs_b.shape == (B, OUT_DIM)
    assert jnp.allclose(jnp.sum(probs_b, axis=-1), jnp.ones(B), atol=1e-5)
    assert jnp.allclose(probs_b, ref_b, atol=2e-3), \
        float(jnp.max(jnp.abs(probs_b - ref_b)))

    # --- Small micro-batch via the same rollout path (no silent truncation) ---
    xs8 = jax.random.normal(kx2, (8, IN_DIM), jnp.float32)
    probs_8 = reinforce_forward_rollout(xs8, padded)
    jax.block_until_ready(probs_8)
    ref_8 = jax.vmap(lambda xi: reinforce_ref_bf16(xi, params))(xs8)
    assert probs_8.shape == (8, OUT_DIM)
    assert jnp.allclose(probs_8, ref_8, atol=1e-3), (probs_8, ref_8)

    print("KERNEL_OK")
</pallas_src>

<mosaic_0001>
module attributes {stable_mosaic.version = 11 : i64} {
  func.func @_reinforce_kernel(%arg0: i32, %arg1: memref<8x8xf32, #tpu.memory_space<vmem>>, %arg2: memref<8x256xf32, #tpu.memory_space<vmem>>, %arg3: memref<1x256xf32, #tpu.memory_space<vmem>>, %arg4: memref<256x256xbf16, #tpu.memory_space<vmem>>, %arg5: memref<1x256xf32, #tpu.memory_space<vmem>>, %arg6: memref<256x256xbf16, #tpu.memory_space<vmem>>, %arg7: memref<1x256xf32, #tpu.memory_space<vmem>>, %arg8: memref<256x8xf32, #tpu.memory_space<vmem>>, %arg9: memref<1x8xf32, #tpu.memory_space<vmem>>, %arg10: memref<8x8xf32, #tpu.memory_space<vmem>>) attributes {dimension_semantics = [#tpu.dimension_semantics<parallel>], iteration_bounds = array<i64: 1>, scalar_prefetch = 0 : i64, scratch_operands = 0 : i64, tpu.core_type = #tpu.core_type<tc>, window_params = [{transform_indices = @transform_0, window_bounds = array<i64: 8, 8>}, {pipeline_mode = #tpu.pipeline_mode<synchronous>, transform_indices = @transform_1, window_bounds = array<i64: 8, 256>}, {pipeline_mode = #tpu.pipeline_mode<synchronous>, transform_indices = @transform_2, window_bounds = array<i64: 1, 256>}, {pipeline_mode = #tpu.pipeline_mode<synchronous>, transform_indices = @transform_3, window_bounds = array<i64: 256, 256>}, {pipeline_mode = #tpu.pipeline_mode<synchronous>, transform_indices = @transform_4, window_bounds = array<i64: 1, 256>}, {pipeline_mode = #tpu.pipeline_mode<synchronous>, transform_indices = @transform_5, window_bounds = array<i64: 256, 256>}, {pipeline_mode = #tpu.pipeline_mode<synchronous>, transform_indices = @transform_6, window_bounds = array<i64: 1, 256>}, {pipeline_mode = #tpu.pipeline_mode<synchronous>, transform_indices = @transform_7, window_bounds = array<i64: 256, 8>}, {pipeline_mode = #tpu.pipeline_mode<synchronous>, transform_indices = @transform_8, window_bounds = array<i64: 1, 8>}, {transform_indices = @transform_9, window_bounds = array<i64: 8, 8>}]} {
    %c0 = arith.constant 0 : index
    %c0_0 = arith.constant 0 : index
    %0 = vector.load %arg1[%c0, %c0_0] : memref<8x8xf32, #tpu.memory_space<vmem>>, vector<8x8xf32>
    %c0_1 = arith.constant 0 : index
    %c0_2 = arith.constant 0 : index
    %1 = vector.load %arg2[%c0_1, %c0_2] : memref<8x256xf32, #tpu.memory_space<vmem>>, vector<8x256xf32>
    %cst = arith.constant dense<0.000000e+00> : vector<8x256xf32>
    %2 = tpu.matmul %0, %1, %cst {dimension_numbers = #tpu.dot_dimension_numbers<[1], [0], [0], [1], [0, 0, 1, 1], [], []>} : vector<8x8xf32>, vector<8x256xf32>, vector<8x256xf32> -> vector<8x256xf32>
    %c0_3 = arith.constant 0 : index
    %c0_4 = arith.constant 0 : index
    %3 = vector.load %arg3[%c0_3, %c0_4] : memref<1x256xf32, #tpu.memory_space<vmem>>, vector<1x256xf32>
    %4 = vector.broadcast %3 : vector<1x256xf32> to vector<8x256xf32>
    %5 = arith.addf %2, %4 : vector<8x256xf32>
    %cst_5 = arith.constant 0.000000e+00 : f32
    %6 = vector.broadcast %cst_5 : f32 to vector<8x256xf32>
    %7 = arith.maximumf %5, %6 : vector<8x256xf32>
    %8 = arith.truncf %7 : vector<8x256xf32> to vector<8x256xbf16>
    %c0_6 = arith.constant 0 : index
    %c0_7 = arith.constant 0 : index
    %9 = vector.load %arg4[%c0_6, %c0_7] : memref<256x256xbf16, #tpu.memory_space<vmem>>, vector<256x256xbf16>
    %cst_8 = arith.constant dense<0.000000e+00> : vector<8x256xf32>
    %10 = tpu.matmul %8, %9, %cst_8 {dimension_numbers = #tpu.dot_dimension_numbers<[1], [0], [0], [1], [0, 0, 1, 1], [], []>} : vector<8x256xbf16>, vector<256x256xbf16>, vector<8x256xf32> -> vector<8x256xf32>
    %c0_9 = arith.constant 0 : index
    %c0_10 = arith.constant 0 : index
    %11 = vector.load %arg5[%c0_9, %c0_10] : memref<1x256xf32, #tpu.memory_space<vmem>>, vector<1x256xf32>
    %12 = vector.broadcast %11 : vector<1x256xf32> to vector<8x256xf32>
    %13 = arith.addf %10, %12 : vector<8x256xf32>
    %cst_11 = arith.constant 0.000000e+00 : f32
    %14 = vector.broadcast %cst_11 : f32 to vector<8x256xf32>
    %15 = arith.maximumf %13, %14 : vector<8x256xf32>
    %16 = arith.truncf %15 : vector<8x256xf32> to vector<8x256xbf16>
    %c0_12 = arith.constant 0 : index
    %c0_13 = arith.constant 0 : index
    %17 = vector.load %arg6[%c0_12, %c0_13] : memref<256x256xbf16, #tpu.memory_space<vmem>>, vector<256x256xbf16>
    %cst_14 = arith.constant dense<0.000000e+00> : vector<8x256xf32>
    %18 = tpu.matmul %16, %17, %cst_14 {dimension_numbers = #tpu.dot_dimension_numbers<[1], [0], [0], [1], [0, 0, 1, 1], [], []>} : vector<8x256xbf16>, vector<256x256xbf16>, vector<8x256xf32> -> vector<8x256xf32>
    %c0_15 = arith.constant 0 : index
    %c0_16 = arith.constant 0 : index
    %19 = vector.load %arg7[%c0_15, %c0_16] : memref<1x256xf32, #tpu.memory_space<vmem>>, vector<1x256xf32>
    %20 = vector.broadcast %19 : vector<1x256xf32> to vector<8x256xf32>
    %21 = arith.addf %18, %20 : vector<8x256xf32>
    %cst_17 = arith.constant 0.000000e+00 : f32
    %22 = vector.broadcast %cst_17 : f32 to vector<8x256xf32>
    %23 = arith.maximumf %21, %22 : vector<8x256xf32>
    %c0_18 = arith.constant 0 : index
    %c0_19 = arith.constant 0 : index
    %24 = vector.load %arg8[%c0_18, %c0_19] : memref<256x8xf32, #tpu.memory_space<vmem>>, vector<256x8xf32>
    %cst_20 = arith.constant dense<0.000000e+00> : vector<8x8xf32>
    %25 = tpu.matmul %23, %24, %cst_20 {dimension_numbers = #tpu.dot_dimension_numbers<[1], [0], [0], [1], [0, 0, 1, 1], [], []>} : vector<8x256xf32>, vector<256x8xf32>, vector<8x8xf32> -> vector<8x8xf32>
    %c0_21 = arith.constant 0 : index
    %c0_22 = arith.constant 0 : index
    %26 = vector.load %arg9[%c0_21, %c0_22] : memref<1x8xf32, #tpu.memory_space<vmem>>, vector<1x8xf32>
    %27 = vector.broadcast %26 : vector<1x8xf32> to vector<8x8xf32>
    %28 = arith.addf %25, %27 : vector<8x8xf32>
    %cst_23 = arith.constant dense<0xFF800000> : vector<8xf32>
    %29 = vector.multi_reduction <maximumf>, %28, %cst_23 [1] : vector<8x8xf32> to vector<8xf32>
    %30 = vector.shape_cast %29 : vector<8xf32> to vector<8x1xf32>
    %31 = vector.broadcast %30 : vector<8x1xf32> to vector<8x8xf32>
    %32 = arith.subf %28, %31 : vector<8x8xf32>
    %33 = math.exp %32 : vector<8x8xf32>
    %cst_24 = arith.constant dense<0.000000e+00> : vector<8xf32>
    %34 = vector.multi_reduction <add>, %33, %cst_24 [1] : vector<8x8xf32> to vector<8xf32>
    %35 = vector.shape_cast %34 : vector<8xf32> to vector<8x1xf32>
    %36 = vector.broadcast %35 : vector<8x1xf32> to vector<8x8xf32>
    %37 = arith.divf %33, %36 : vector<8x8xf32>
    %c0_25 = arith.constant 0 : index
    %c0_26 = arith.constant 0 : index
    %38 = vector.load %arg10[%c0_25, %c0_26] : memref<8x8xf32, #tpu.memory_space<vmem>>, vector<8x8xf32>
    tpu.vector_store %arg10[%c0_25, %c0_26], %37 {strides = array<i32>} : memref<8x8xf32, #tpu.memory_space<vmem>>, vector<8x8xf32>,
    return
  }
  func.func @transform_0(%arg0: i32) -> (i32, i32) {
    %c0_i32 = arith.constant 0 : i32
    %c0_i32_0 = arith.constant 0 : i32
    return %arg0, %c0_i32 : i32, i32
  }
  func.func @transform_1(%arg0: i32) -> (i32, i32) {
    %c0_i32 = arith.constant 0 : i32
    %c0_i32_0 = arith.constant 0 : i32
    %c0_i32_1 = arith.constant 0 : i32
    return %c0_i32, %c0_i32_0 : i32, i32
  }
  func.func @transform_2(%arg0: i32) -> (i32, i32) {
    %c0_i32 = arith.constant 0 : i32
    %c0_i32_0 = arith.constant 0 : i32
    %c0_i32_1 = arith.constant 0 : i32
    return %c0_i32, %c0_i32_0 : i32, i32
  }
  func.func @transform_3(%arg0: i32) -> (i32, i32) {
    %c0_i32 = arith.constant 0 : i32
    %c0_i32_0 = arith.constant 0 : i32
    %c0_i32_1 = arith.constant 0 : i32
    return %c0_i32, %c0_i32_0 : i32, i32
  }
  func.func @transform_4(%arg0: i32) -> (i32, i32) {
    %c0_i32 = arith.constant 0 : i32
    %c0_i32_0 = arith.constant 0 : i32
    %c0_i32_1 = arith.constant 0 : i32
    return %c0_i32, %c0_i32_0 : i32, i32
  }
  func.func @transform_5(%arg0: i32) -> (i32, i32) {
    %c0_i32 = arith.constant 0 : i32
    %c0_i32_0 = arith.constant 0 : i32
    %c0_i32_1 = arith.constant 0 : i32
    return %c0_i32, %c0_i32_0 : i32, i32
  }
  func.func @transform_6(%arg0: i32) -> (i32, i32) {
    %c0_i32 = arith.constant 0 : i32
    %c0_i32_0 = arith.constant 0 : i32
    %c0_i32_1 = arith.constant 0 : i32
    return %c0_i32, %c0_i32_0 : i32, i32
  }
  func.func @transform_7(%arg0: i32) -> (i32, i32) {
    %c0_i32 = arith.constant 0 : i32
    %c0_i32_0 = arith.constant 0 : i32
    %c0_i32_1 = arith.constant 0 : i32
    return %c0_i32, %c0_i32_0 : i32, i32
  }
  func.func @transform_8(%arg0: i32) -> (i32, i32) {
    %c0_i32 = arith.constant 0 : i32
    %c0_i32_0 = arith.constant 0 : i32
    %c0_i32_1 = arith.constant 0 : i32
    return %c0_i32, %c0_i32_0 : i32, i32
  }
  func.func @transform_9(%arg0: i32) -> (i32, i32) {
    %c0_i32 = arith.constant 0 : i32
    %c0_i32_0 = arith.constant 0 : i32
    return %arg0, %c0_i32 : i32, i32
  }
}

</mosaic_0001>

<llo_original>
// kernel: reinforce_forward.1
$region0: #{reinforce_forward.1}
  #allocation0 [shape = 'u32[]', space=smem, size = 0x4, offset = 0x4, fixed_abs, tag = 'smem constant byte address 0x4 - core index']
  #allocation1 [shape = 'u32[72,128]{1,0:T(1,128)}', space=vmem, size = 0x9000, scoped, tag = 'internal scratch']
  %s0 = inlined_call_operand.vmem [shape: f32[8,8], index: 0, kind: input, shape index: {}]
  %s1 = inlined_call_operand.vmem [shape: f32[8,256], index: 1, kind: input, shape index: {}]
  %s2 = inlined_call_operand.hbm [shape: f32[1,256], index: 2, kind: input, shape index: {}]
  %s3 = inlined_call_operand.vmem [shape: bf16[256,256], index: 3, kind: input, shape index: {}]
  %s4 = inlined_call_operand.hbm [shape: f32[1,256], index: 4, kind: input, shape index: {}]
  %s5 = inlined_call_operand.hbm [shape: bf16[256,256], index: 5, kind: input, shape index: {}]
  %s6 = inlined_call_operand.hbm [shape: f32[1,256], index: 6, kind: input, shape index: {}]
  %s7 = inlined_call_operand.vmem [shape: f32[256,8], index: 7, kind: input, shape index: {}]
  %s8 = inlined_call_operand.vmem [shape: f32[1,8], index: 8, kind: input, shape index: {}]
  %s9 = inlined_call_operand.vmem [shape: f32[8,8], index: 9, kind: output, shape index: {}]
  %s10 = sld [smem:[#allocation0]]
  $region62: #{reinforce_forward.1} parent=0
    _
  %s12 = ssub.s32 1, %s10
  %s13 = scalar_select 0, %s12, %s10
  $region1: #{reinforce_forward.1} parent=0
    #allocation2 [shape = 'u8[1024]{0}', space=vmem, size = 0x400, scoped, tag = 'input window, operand 2, single buffered']
    #allocation3 [shape = 's32[1]{0}', space=sflag, size = 0x4, scoped, tag = 'scoped memory for reinforce_forward.1']
    #allocation4 [shape = 'u8[1024]{0}', space=vmem, size = 0x400, scoped, tag = 'input window, operand 4, single buffered']
    #allocation5 [shape = 's32[1]{0}', space=sflag, size = 0x4, scoped, tag = 'scoped memory for reinforce_forward.1']
    #allocation6 [shape = 'u8[131072]{0}', space=vmem, size = 0x20000, scoped, tag = 'input window, operand 5, single buffered']
    #allocation7 [shape = 'u8[1024]{0}', space=vmem, size = 0x400, scoped, tag = 'input window, operand 6, single buffered']
    #allocation8 [shape = 's32[1]{0}', space=sflag, size = 0x4, scoped, tag = 'scoped memory for reinforce_forward.1']
    %14 = vsyncpa [#allocation3], 0
    %15 = vsyncpa [#allocation5], 0
    %16 = vsyncpa [#allocation8], 0
    // Predicated region
    $region2: #{reinforce_forward.1} parent=1 // pred_check
      _
    $region3: #{reinforce_forward.1} parent=1 // pred_check_branch
      %18 = sbr.rel (0) target = $region5
    $region4: #{reinforce_forward.1} parent=1 // pred_region
      _
    $region5: #{reinforce_forward.1} parent=1 // pred_fallthru
      _
    // Predicated region
    $region6: #{reinforce_forward.1} parent=1 // pred_check
      _
    $region7: #{reinforce_forward.1} parent=1 // pred_check_branch
      %20 = sbr.rel (0) target = $region9
    $region8: #{reinforce_forward.1} parent=1 // pred_region
      _
    $region9: #{reinforce_forward.1} parent=1 // pred_fallthru
      _
    // Predicated region
    $region10: #{reinforce_forward.1} parent=1 // pred_check
      _
    $region11: #{reinforce_forward.1} parent=1 // pred_check_branch
      %22 = sbr.rel (0) target = $region13
    $region12: #{reinforce_forward.1} parent=1 // pred_region
      %24 = vsyncadd [#allocation3], 0
      %s26 = sshll.u32 %s2, 4
      %s27 = int_to_ptr.hbm [resolvable:$true] %s26
      %s28 = sshll.u32 [#allocation2], 4
      %s29 = int_to_ptr.vmem [resolvable:$true] %s28
      %31 = dma.hbm_to_vmem [thread:$0]  %s27, 32, %s29, [#allocation3]
    $region13: #{reinforce_forward.1} parent=1 // pred_fallthru
      _
    // Predicated region
    $region14: #{reinforce_forward.1} parent=1 // pred_check
      _
    $region15: #{reinforce_forward.1} parent=1 // pred_check_branch
      %33 = sbr.rel (0) target = $region17
    $region16: #{reinforce_forward.1} parent=1 // pred_region
      _
    $region17: #{reinforce_forward.1} parent=1 // pred_fallthru
      _
    // Predicated region
    $region18: #{reinforce_forward.1} parent=1 // pred_check
      _
    $region19: #{reinforce_forward.1} parent=1 // pred_check_branch
      %35 = sbr.rel (0) target = $region21
    $region20: #{reinforce_forward.1} parent=1 // pred_region
      %37 = vsyncadd [#allocation5], 0
      %s39 = sshll.u32 %s4, 4
      %s40 = int_to_ptr.hbm [resolvable:$true] %s39
      %s41 = sshll.u32 [#allocation4], 4
      %s42 = int_to_ptr.vmem [resolvable:$true] %s41
      %44 = dma.hbm_to_vmem [thread:$0]  %s40, 32, %s42, [#allocation5]
    $region21: #{reinforce_forward.1} parent=1 // pred_fallthru
      _
    // Predicated region
    $region22: #{reinforce_forward.1} parent=1 // pred_check
      _
    $region23: #{reinforce_forward.1} parent=1 // pred_check_branch
      %46 = sbr.rel (0) target = $region25
    $region24: #{reinforce_forward.1} parent=1 // pred_region
      %48 = vsyncadd [#allocation5], 0
      %s49 = sshll.u32 %s5, 4
      %s50 = int_to_ptr.hbm [resolvable:$true] %s49
      %s51 = sshll.u32 [#allocation6], 4
      %s52 = int_to_ptr.vmem [resolvable:$true] %s51
      %57 = dma.hbm_to_vmem [thread:$0]  %s50, 4096, %s52, [#allocation5], 128, 128, 8
    $region25: #{reinforce_forward.1} parent=1 // pred_fallthru
      _
    // Predicated region
    $region26: #{reinforce_forward.1} parent=1 // pred_check
      _
    $region27: #{reinforce_forward.1} parent=1 // pred_check_branch
      %59 = sbr.rel (0) target = $region29
    $region28: #{reinforce_forward.1} parent=1 // pred_region
      %61 = vsyncadd [#allocation8], 0
      %s63 = sshll.u32 %s6, 4
      %s64 = int_to_ptr.hbm [resolvable:$true] %s63
      %s65 = sshll.u32 [#allocation7], 4
      %s66 = int_to_ptr.vmem [resolvable:$true] %s65
      %68 = dma.hbm_to_vmem [thread:$0]  %s64, 32, %s66, [#allocation8]
    $region29: #{reinforce_forward.1} parent=1 // pred_fallthru
      _
    // Predicated region
    $region30: #{reinforce_forward.1} parent=1 // pred_check
      _
    $region31: #{reinforce_forward.1} parent=1 // pred_check_branch
      %70 = sbr.rel (0) target = $region33
    $region32: #{reinforce_forward.1} parent=1 // pred_region
      _
    $region33: #{reinforce_forward.1} parent=1 // pred_fallthru
      _
    // Predicated region
    $region34: #{reinforce_forward.1} parent=1 // pred_check
      _
    $region35: #{reinforce_forward.1} parent=1 // pred_check_branch
      %72 = sbr.rel (0) target = $region37
    $region36: #{reinforce_forward.1} parent=1 // pred_region
      _
    $region37: #{reinforce_forward.1} parent=1 // pred_fallthru
      _
    // Predicated region
    $region38: #{reinforce_forward.1} parent=1 // pred_check
      _
    $region39: #{reinforce_forward.1} parent=1 // pred_check_branch
      %74 = sbr.rel (0) target = $region41
    $region40: #{reinforce_forward.1} parent=1 // pred_region
      %76 = dma.done [#allocation3], 32
    $region41: #{reinforce_forward.1} parent=1 // pred_fallthru
      _
    // Predicated region
    $region42: #{reinforce_forward.1} parent=1 // pred_check
      _
    $region43: #{reinforce_forward.1} parent=1 // pred_check_branch
      %78 = sbr.rel (0) target = $region45
    $region44: #{reinforce_forward.1} parent=1 // pred_region
      %80 = dma.done [#allocation5], 32
    $region45: #{reinforce_forward.1} parent=1 // pred_fallthru
      _
    // Predicated region
    $region46: #{reinforce_forward.1} parent=1 // pred_check
      _
    $region47: #{reinforce_forward.1} parent=1 // pred_check_branch
      %82 = sbr.rel (0) target = $region49
    $region48: #{reinforce_forward.1} parent=1 // pred_region
      %84 = dma.done [#allocation5], 4096
    $region49: #{reinforce_forward.1} parent=1 // pred_fallthru
      _
    // Predicated region
    $region50: #{reinforce_forward.1} parent=1 // pred_check
      _
    $region51: #{reinforce_forward.1} parent=1 // pred_check_branch
      %86 = sbr.rel (0) target = $region53
    $region52: #{reinforce_forward.1} parent=1 // pred_region
      %88 = dma.done [#allocation8], 32
    $region53: #{reinforce_forward.1} parent=1 // pred_fallthru
      _
    %v89 = vld [vmem:[%s0] sm:$0xff]
    %v90 = vld [vmem:[%s1] sm:$0xff]
    %v91 = vld [vmem:[%s1 + $0x8] sm:$0xff]
    %v92 = vld [vmem:[#allocation2] sm:$0x3]
    %v94 = vperm.slane %v92, 0
    %v95 = vperm.slane %v92, 1
    %vm98 = vcmask 64512
    %v100 = vsel %vm98, %v89, 0
    %102 = vmatpush.msra.mxu0 0.0
    %103 = vmatpush.msra.mxu0 0.0
    %104 = vmatpush.msra.mxu0 0.0
    %105 = vmatpush.msra.mxu0 0.0
    %106 = vmatpush.msra.mxu0 0.0
    %107 = vmatpush.msra.mxu0 0.0
    %108 = vmatpush.msra.mxu0 0.0
    %109 = vmatpush.msra.mxu0 0.0
    %110 = vmatpush.msra.mxu0 0.0
    %111 = vmatpush.msra.mxu0 0.0
    %112 = vmatpush.msra.mxu0 0.0
    %113 = vmatpush.msra.mxu0 0.0
    %114 = vmatpush.msra.mxu0 0.0
    %115 = vmatpush.msra.mxu0 0.0
    %116 = vmatpush.msra.mxu0 0.0
    %117 = vmatpush.msra.mxu0 %v90
    %118 = vmatmul.f32.gmra.mxu0 %v100
    %v119 = vpop.f32.mrf.mxu0
    %v120 = vadd.f32 %v94, %v119
    %121 = vdwg.mxu0
    %122 = vmatpush.msra.mxu0 0.0
    %123 = vmatpush.msra.mxu0 0.0
    %124 = vmatpush.msra.mxu0 0.0
    %125 = vmatpush.msra.mxu0 0.0
    %126 = vmatpush.msra.mxu0 0.0
    %127 = vmatpush.msra.mxu0 0.0
    %128 = vmatpush.msra.mxu0 0.0
    %129 = vmatpush.msra.mxu0 0.0
    %130 = vmatpush.msra.mxu0 0.0
    %131 = vmatpush.msra.mxu0 0.0
    %132 = vmatpush.msra.mxu0 0.0
    %133 = vmatpush.msra.mxu0 0.0
    %134 = vmatpush.msra.mxu0 0.0
    %135 = vmatpush.msra.mxu0 0.0
    %136 = vmatpush.msra.mxu0 0.0
    %137 = vmatpush.msra.mxu0 %v91
    %138 = vmatmul.f32.gmra.mxu0 %v100
    %v139 = vpop.f32.mrf.mxu0
    %v140 = vadd.f32 %v95, %v139
    %141 = vdwg.mxu0
    %v142 = vmax.f32 %v120, 0.0
    %v143 = vmax.f32 %v140, 0.0
    %v144 = vpack.c.bf16 %v142, %v142
    %v145 = vpack.c.bf16 %v143, %v143
    %v146 = vld [vmem:[%s3] sm:$0xff]
    %v147 = vld [vmem:[%s3 + $0x8] sm:$0xff]
    %v148 = vld [vmem:[%s3 + $0x10] sm:$0xff]
    %v149 = vld [vmem:[%s3 + $0x18] sm:$0xff]
    %v150 = vld [vmem:[%s3 + $0x20] sm:$0xff]
    %v151 = vld [vmem:[%s3 + $0x28] sm:$0xff]
    %v152 = vld [vmem:[%s3 + $0x30] sm:$0xff]
    %v153 = vld [vmem:[%s3 + $0x38] sm:$0xff]
    %v154 = vld [vmem:[%s3 + $0x40] sm:$0xff]
    %v155 = vld [vmem:[%s3 + $0x48] sm:$0xff]
    %v156 = vld [vmem:[%s3 + $0x50] sm:$0xff]
    %v157 = vld [vmem:[%s3 + $0x58] sm:$0xff]
    %v158 = vld [vmem:[%s3 + $0x60] sm:$0xff]
    %v159 = vld [vmem:[%s3 + $0x68] sm:$0xff]
    %v160 = vld [vmem:[%s3 + $0x70] sm:$0xff]
    %v161 = vld [vmem:[%s3 + $0x78] sm:$0xff]
    %v162 = vld [vmem:[%s3 + $0x80] sm:$0xff]
    %v163 = vld [vmem:[%s3 + $0x88] sm:$0xff]
    %v164 = vld [vmem:[%s3 + $0x90] sm:$0xff]
    %v165 = vld [vmem:[%s3 + $0x98] sm:$0xff]
    %v166 = vld [vmem:[%s3 + $0xa0] sm:$0xff]
    %v167 = vld [vmem:[%s3 + $0xa8] sm:$0xff]
    %v168 = vld [vmem:[%s3 + $0xb0] sm:$0xff]
    %v169 = vld [vmem:[%s3 + $0xb8] sm:$0xff]
    %v170 = vld [vmem:[%s3 + $0xc0] sm:$0xff]
    %v171 = vld [vmem:[%s3 + $0xc8] sm:$0xff]
    %v172 = vld [vmem:[%s3 + $0xd0] sm:$0xff]
    %v173 = vld [vmem:[%s3 + $0xd8] sm:$0xff]
    %v174 = vld [vmem:[%s3 + $0xe0] sm:$0xff]
    %v175 = vld [vmem:[%s3 + $0xe8] sm:$0xff]
    %v176 = vld [vmem:[%s3 + $0xf0] sm:$0xff]
    %v177 = vld [vmem:[%s3 + $0xf8] sm:$0xff]
    %v178 = vld [vmem:[#allocation4] sm:$0x3]
    %v180 = vperm.slane %v178, 0
    %v181 = vperm.slane %v178, 1
    %v216 = vunpack.c.l.b16 %v146
    %v217 = vunpack.c.h.b16 %v146
    %v218 = vunpack.c.l.b16 %v147
    %v219 = vunpack.c.h.b16 %v147
    %v220 = vunpack.c.l.b16 %v148
    %v221 = vunpack.c.h.b16 %v148
    %v222 = vunpack.c.l.b16 %v149
    %v223 = vunpack.c.h.b16 %v149
    %v224 = vunpack.c.l.b16 %v150
    %v225 = vunpack.c.h.b16 %v150
    %v226 = vunpack.c.l.b16 %v151
    %v227 = vunpack.c.h.b16 %v151
    %v228 = vunpack.c.l.b16 %v152
    %v229 = vunpack.c.h.b16 %v152
    %v230 = vunpack.c.l.b16 %v153
    %v231 = vunpack.c.h.b16 %v153
    %v232 = vunpack.c.l.b16 %v154
    %v233 = vunpack.c.h.b16 %v154
    %v234 = vunpack.c.l.b16 %v155
    %v235 = vunpack.c.h.b16 %v155
    %v236 = vunpack.c.l.b16 %v156
    %v237 = vunpack.c.h.b16 %v156
    %v238 = vunpack.c.l.b16 %v157
    %v239 = vunpack.c.h.b16 %v157
    %v240 = vunpack.c.l.b16 %v158
    %v241 = vunpack.c.h.b16 %v158
    %v242 = vunpack.c.l.b16 %v159
    %v243 = vunpack.c.h.b16 %v159
    %v244 = vunpack.c.l.b16 %v160
    %v245 = vunpack.c.h.b16 %v160
    %v246 = vunpack.c.l.b16 %v161
    %v247 = vunpack.c.h.b16 %v161
    %v248 = vunpack.c.l.b16 %v162
    %v249 = vunpack.c.h.b16 %v162
    %v250 = vunpack.c.l.b16 %v163
    %v251 = vunpack.c.h.b16 %v163
    %v252 = vunpack.c.l.b16 %v164
    %v253 = vunpack.c.h.b16 %v164
    %v254 = vunpack.c.l.b16 %v165
    %v255 = vunpack.c.h.b16 %v165
    %v256 = vunpack.c.l.b16 %v166
    %v257 = vunpack.c.h.b16 %v166
    %v258 = vunpack.c.l.b16 %v167
    %v259 = vunpack.c.h.b16 %v167
    %v260 = vunpack.c.l.b16 %v168
    %v261 = vunpack.c.h.b16 %v168
    %v262 = vunpack.c.l.b16 %v169
    %v263 = vunpack.c.h.b16 %v169
    %v264 = vunpack.c.l.b16 %v170
    %v265 = vunpack.c.h.b16 %v170
    %v266 = vunpack.c.l.b16 %v171
    %v267 = vunpack.c.h.b16 %v171
    %v268 = vunpack.c.l.b16 %v172
    %v269 = vunpack.c.h.b16 %v172
    %v270 = vunpack.c.l.b16 %v173
    %v271 = vunpack.c.h.b16 %v173
    %v272 = vunpack.c.l.b16 %v174
    %v273 = vunpack.c.h.b16 %v174
    %v274 = vunpack.c.l.b16 %v175
    %v275 = vunpack.c.h.b16 %v175
    %v276 = vunpack.c.l.b16 %v176
    %v277 = vunpack.c.h.b16 %v176
    %v278 = vunpack.c.l.b16 %v177
    %v279 = vunpack.c.h.b16 %v177
    %v280 = vpack.c.b16 %v218, %v216
    %v281 = vpack.c.b16 %v219, %v217
    %v282 = vpack.c.b16 %v222, %v220
    %v283 = vpack.c.b16 %v223, %v221
    %v284 = vpack.c.b16 %v226, %v224
    %v285 = vpack.c.b16 %v227, %v225
    %v286 = vpack.c.b16 %v230, %v228
    %v287 = vpack.c.b16 %v231, %v229
    %v288 = vpack.c.b16 %v234, %v232
    %v289 = vpack.c.b16 %v235, %v233
    %v290 = vpack.c.b16 %v238, %v236
    %v291 = vpack.c.b16 %v239, %v237
    %v292 = vpack.c.b16 %v242, %v240
    %v293 = vpack.c.b16 %v243, %v241
    %v294 = vpack.c.b16 %v246, %v244
    %v295 = vpack.c.b16 %v247, %v245
    %v296 = vpack.c.b16 %v250, %v248
    %v297 = vpack.c.b16 %v251, %v249
    %v298 = vpack.c.b16 %v254, %v252
    %v299 = vpack.c.b16 %v255, %v253
    %v300 = vpack.c.b16 %v258, %v256
    %v301 = vpack.c.b16 %v259, %v257
    %v302 = vpack.c.b16 %v262, %v260
    %v303 = vpack.c.b16 %v263, %v261
    %v304 = vpack.c.b16 %v266, %v264
    %v305 = vpack.c.b16 %v267, %v265
    %v306 = vpack.c.b16 %v270, %v268
    %v307 = vpack.c.b16 %v271, %v269
    %v308 = vpack.c.b16 %v274, %v272
    %v309 = vpack.c.b16 %v275, %v273
    %v310 = vpack.c.b16 %v278, %v276
    %v311 = vpack.c.b16 %v279, %v277
    %344 = vmatpush.bf16.msra.mxu0 %v294
    %345 = vmatpush.bf16.msra.mxu0 %v292
    %346 = vmatpush.bf16.msra.mxu0 %v290
    %347 = vmatpush.bf16.msra.mxu0 %v288
    %348 = vmatpush.bf16.msra.mxu0 %v286
    %349 = vmatpush.bf16.msra.mxu0 %v284
    %350 = vmatpush.bf16.msra.mxu0 %v282
    %351 = vmatpush.bf16.msra.mxu0 %v280
    %352 = vmatmul.bf16.gmra.mxu0 %v144
    %v353 = vpop.f32.mrf.mxu0
    %v354 = vadd.f32 %v180, %v353
    %v355 = vpop.f32.mrf.mxu0
    %356 = vdwg.mxu0
    %357 = vmatpush.bf16.msra.mxu0 %v310
    %358 = vmatpush.bf16.msra.mxu0 %v308
    %359 = vmatpush.bf16.msra.mxu0 %v306
    %360 = vmatpush.bf16.msra.mxu0 %v304
    %361 = vmatpush.bf16.msra.mxu0 %v302
    %362 = vmatpush.bf16.msra.mxu0 %v300
    %363 = vmatpush.bf16.msra.mxu0 %v298
    %364 = vmatpush.bf16.msra.mxu0 %v296
    %365 = vmatmul.bf16.gmra.mxu0 %v145
    %v366 = vpop.f32.mrf.mxu0
    %v367 = vadd.f32 %v354, %v366
    %v368 = vpop.f32.mrf.mxu0
    %369 = vdwg.mxu0
    %370 = vmatpush.bf16.msra.mxu0 %v295
    %371 = vmatpush.bf16.msra.mxu0 %v293
    %372 = vmatpush.bf16.msra.mxu0 %v291
    %373 = vmatpush.bf16.msra.mxu0 %v289
    %374 = vmatpush.bf16.msra.mxu0 %v287
    %375 = vmatpush.bf16.msra.mxu0 %v285
    %376 = vmatpush.bf16.msra.mxu0 %v283
    %377 = vmatpush.bf16.msra.mxu0 %v281
    %378 = vmatmul.bf16.gmra.mxu0 %v144
    %v379 = vpop.f32.mrf.mxu0
    %v380 = vadd.f32 %v181, %v379
    %v381 = vpop.f32.mrf.mxu0
    %382 = vdwg.mxu0
    %383 = vmatpush.bf16.msra.mxu0 %v311
    %384 = vmatpush.bf16.msra.mxu0 %v309
    %385 = vmatpush.bf16.msra.mxu0 %v307
    %386 = vmatpush.bf16.msra.mxu0 %v305
    %387 = vmatpush.bf16.msra.mxu0 %v303
    %388 = vmatpush.bf16.msra.mxu0 %v301
    %389 = vmatpush.bf16.msra.mxu0 %v299
    %390 = vmatpush.bf16.msra.mxu0 %v297
    %391 = vmatmul.bf16.gmra.mxu0 %v145
    %v392 = vpop.f32.mrf.mxu0
    %v393 = vadd.f32 %v380, %v392
    %v394 = vpop.f32.mrf.mxu0
    %395 = vdwg.mxu0
    %v396 = vmax.f32 %v367, 0.0
    %v397 = vmax.f32 %v393, 0.0
    %v398 = vpack.c.bf16 %v396, %v396
    %v399 = vpack.c.bf16 %v397, %v397
    %v400 = vld [vmem:[#allocation6] sm:$0xff]
    %v401 = vld [vmem:[#allocation6 + $0x8] sm:$0xff]
    %v402 = vld [vmem:[#allocation6 + $0x10] sm:$0xff]
    %v403 = vld [vmem:[#allocation6 + $0x18] sm:$0xff]
    %v404 = vld [vmem:[#allocation6 + $0x20] sm:$0xff]
    %v405 = vld [vmem:[#allocation6 + $0x28] sm:$0xff]
    %v406 = vld [vmem:[#allocation6 + $0x30] sm:$0xff]
    %v407 = vld [vmem:[#allocation6 + $0x38] sm:$0xff]
    %v408 = vld [vmem:[#allocation6 + $0x40] sm:$0xff]
    %v409 = vld [vmem:[#allocation6 + $0x48] sm:$0xff]
    %v410 = vld [vmem:[#allocation6 + $0x50] sm:$0xff]
    %v411 = vld [vmem:[#allocation6 + $0x58] sm:$0xff]
    %v412 = vld [vmem:[#allocation6 + $0x60] sm:$0xff]
    %v413 = vld [vmem:[#allocation6 + $0x68] sm:$0xff]
    %v414 = vld [vmem:[#allocation6 + $0x70] sm:$0xff]
    %v415 = vld [vmem:[#allocation6 + $0x78] sm:$0xff]
    %v416 = vld [vmem:[#allocation6 + $0x80] sm:$0xff]
    %v417 = vld [vmem:[#allocation6 + $0x88] sm:$0xff]
    %v418 = vld [vmem:[#allocation6 + $0x90] sm:$0xff]
    %v419 = vld [vmem:[#allocation6 + $0x98] sm:$0xff]
    %v420 = vld [vmem:[#allocation6 + $0xa0] sm:$0xff]
    %v421 = vld [vmem:[#allocation6 + $0xa8] sm:$0xff]
    %v422 = vld [vmem:[#allocation6 + $0xb0] sm:$0xff]
    %v423 = vld [vmem:[#allocation6 + $0xb8] sm:$0xff]
    %v424 = vld [vmem:[#allocation6 + $0xc0] sm:$0xff]
    %v425 = vld [vmem:[#allocation6 + $0xc8] sm:$0xff]
    %v426 = vld [vmem:[#allocation6 + $0xd0] sm:$0xff]
    %v427 = vld [vmem:[#allocation6 + $0xd8] sm:$0xff]
    %v428 = vld [vmem:[#allocation6 + $0xe0] sm:$0xff]
    %v429 = vld [vmem:[#allocation6 + $0xe8] sm:$0xff]
    %v430 = vld [vmem:[#allocation6 + $0xf0] sm:$0xff]
    %v431 = vld [vmem:[#allocation6 + $0xf8] sm:$0xff]
    %v432 = vld [vmem:[#allocation7] sm:$0x3]
    %v434 = vperm.slane %v432, 0
    %v435 = vperm.slane %v432, 1
    %v470 = vunpack.c.l.b16 %v400
    %v471 = vunpack.c.h.b16 %v400
    %v472 = vunpack.c.l.b16 %v401
    %v473 = vunpack.c.h.b16 %v401
    %v474 = vunpack.c.l.b16 %v402
    %v475 = vunpack.c.h.b16 %v402
    %v476 = vunpack.c.l.b16 %v403
    %v477 = vunpack.c.h.b16 %v403
    %v478 = vunpack.c.l.b16 %v404
    %v479 = vunpack.c.h.b16 %v404
    %v480 = vunpack.c.l.b16 %v405
    %v481 = vunpack.c.h.b16 %v405
    %v482 = vunpack.c.l.b16 %v406
    %v483 = vunpack.c.h.b16 %v406
    %v484 = vunpack.c.l.b16 %v407
    %v485 = vunpack.c.h.b16 %v407
    %v486 = vunpack.c.l.b16 %v408
    %v487 = vunpack.c.h.b16 %v408
    %v488 = vunpack.c.l.b16 %v409
    %v489 = vunpack.c.h.b16 %v409
    %v490 = vunpack.c.l.b16 %v410
    %v491 = vunpack.c.h.b16 %v410
    %v492 = vunpack.c.l.b16 %v411
    %v493 = vunpack.c.h.b16 %v411
    %v494 = vunpack.c.l.b16 %v412
    %v495 = vunpack.c.h.b16 %v412
    %v496 = vunpack.c.l.b16 %v413
    %v497 = vunpack.c.h.b16 %v413
    %v498 = vunpack.c.l.b16 %v414
    %v499 = vunpack.c.h.b16 %v414
    %v500 = vunpack.c.l.b16 %v415
    %v501 = vunpack.c.h.b16 %v415
    %v502 = vunpack.c.l.b16 %v416
    %v503 = vunpack.c.h.b16 %v416
    %v504 = vunpack.c.l.b16 %v417
    %v505 = vunpack.c.h.b16 %v417
    %v506 = vunpack.c.l.b16 %v418
    %v507 = vunpack.c.h.b16 %v418
    %v508 = vunpack.c.l.b16 %v419
    %v509 = vunpack.c.h.b16 %v419
    %v510 = vunpack.c.l.b16 %v420
    %v511 = vunpack.c.h.b16 %v420
    %v512 = vunpack.c.l.b16 %v421
    %v513 = vunpack.c.h.b16 %v421
    %v514 = vunpack.c.l.b16 %v422
    %v515 = vunpack.c.h.b16 %v422
    %v516 = vunpack.c.l.b16 %v423
    %v517 = vunpack.c.h.b16 %v423
    %v518 = vunpack.c.l.b16 %v424
    %v519 = vunpack.c.h.b16 %v424
    %v520 = vunpack.c.l.b16 %v425
    %v521 = vunpack.c.h.b16 %v425
    %v522 = vunpack.c.l.b16 %v426
    %v523 = vunpack.c.h.b16 %v426
    %v524 = vunpack.c.l.b16 %v427
    %v525 = vunpack.c.h.b16 %v427
    %v526 = vunpack.c.l.b16 %v428
    %v527 = vunpack.c.h.b16 %v428
    %v528 = vunpack.c.l.b16 %v429
    %v529 = vunpack.c.h.b16 %v429
    %v530 = vunpack.c.l.b16 %v430
    %v531 = vunpack.c.h.b16 %v430
    %v532 = vunpack.c.l.b16 %v431
    %v533 = vunpack.c.h.b16 %v431
    %v534 = vpack.c.b16 %v472, %v470
    %v535 = vpack.c.b16 %v473, %v471
    %v536 = vpack.c.b16 %v476, %v474
    %v537 = vpack.c.b16 %v477, %v475
    %v538 = vpack.c.b16 %v480, %v478
    %v539 = vpack.c.b16 %v481, %v479
    %v540 = vpack.c.b16 %v484, %v482
    %v541 = vpack.c.b16 %v485, %v483
    %v542 = vpack.c.b16 %v488, %v486
    %v543 = vpack.c.b16 %v489, %v487
    %v544 = vpack.c.b16 %v492, %v490
    %v545 = vpack.c.b16 %v493, %v491
    %v546 = vpack.c.b16 %v496, %v494
    %v547 = vpack.c.b16 %v497, %v495
    %v548 = vpack.c.b16 %v500, %v498
    %v549 = vpack.c.b16 %v501, %v499
    %v550 = vpack.c.b16 %v504, %v502
    %v551 = vpack.c.b16 %v505, %v503
    %v552 = vpack.c.b16 %v508, %v506
    %v553 = vpack.c.b16 %v509, %v507
    %v554 = vpack.c.b16 %v512, %v510
    %v555 = vpack.c.b16 %v513, %v511
    %v556 = vpack.c.b16 %v516, %v514
    %v557 = vpack.c.b16 %v517, %v515
    %v558 = vpack.c.b16 %v520, %v518
    %v559 = vpack.c.b16 %v521, %v519
    %v560 = vpack.c.b16 %v524, %v522
    %v561 = vpack.c.b16 %v525, %v523
    %v562 = vpack.c.b16 %v528, %v526
    %v563 = vpack.c.b16 %v529, %v527
    %v564 = vpack.c.b16 %v532, %v530
    %v565 = vpack.c.b16 %v533, %v531
    %598 = vmatpush.bf16.msra.mxu0 %v548
    %599 = vmatpush.bf16.msra.mxu0 %v546
    %600 = vmatpush.bf16.msra.mxu0 %v544
    %601 = vmatpush.bf16.msra.mxu0 %v542
    %602 = vmatpush.bf16.msra.mxu0 %v540
    %603 = vmatpush.bf16.msra.mxu0 %v538
    %604 = vmatpush.bf16.msra.mxu0 %v536
    %605 = vmatpush.bf16.msra.mxu0 %v534
    %606 = vmatmul.bf16.gmra.mxu0 %v398
    %v607 = vpop.f32.mrf.mxu0
    %v608 = vadd.f32 %v434, %v607
    %v609 = vpop.f32.mrf.mxu0
    %610 = vdwg.mxu0
    %611 = vmatpush.bf16.msra.mxu0 %v564
    %612 = vmatpush.bf16.msra.mxu0 %v562
    %613 = vmatpush.bf16.msra.mxu0 %v560
    %614 = vmatpush.bf16.msra.mxu0 %v558
    %615 = vmatpush.bf16.msra.mxu0 %v556
    %616 = vmatpush.bf16.msra.mxu0 %v554
    %617 = vmatpush.bf16.msra.mxu0 %v552
    %618 = vmatpush.bf16.msra.mxu0 %v550
    %619 = vmatmul.bf16.gmra.mxu0 %v399
    %v620 = vpop.f32.mrf.mxu0
    %v621 = vadd.f32 %v608, %v620
    %v622 = vpop.f32.mrf.mxu0
    %623 = vdwg.mxu0
    %624 = vmatpush.bf16.msra.mxu0 %v549
    %625 = vmatpush.bf16.msra.mxu0 %v547
    %626 = vmatpush.bf16.msra.mxu0 %v545
    %627 = vmatpush.bf16.msra.mxu0 %v543
    %628 = vmatpush.bf16.msra.mxu0 %v541
    %629 = vmatpush.bf16.msra.mxu0 %v539
    %630 = vmatpush.bf16.msra.mxu0 %v537
    %631 = vmatpush.bf16.msra.mxu0 %v535
    %632 = vmatmul.bf16.gmra.mxu0 %v398
    %v633 = vpop.f32.mrf.mxu0
    %v634 = vadd.f32 %v435, %v633
    %v635 = vpop.f32.mrf.mxu0
    %636 = vdwg.mxu0
    %637 = vmatpush.bf16.msra.mxu0 %v565
    %638 = vmatpush.bf16.msra.mxu0 %v563
    %639 = vmatpush.bf16.msra.mxu0 %v561
    %640 = vmatpush.bf16.msra.mxu0 %v559
    %641 = vmatpush.bf16.msra.mxu0 %v557
    %642 = vmatpush.bf16.msra.mxu0 %v555
    %643 = vmatpush.bf16.msra.mxu0 %v553
    %644 = vmatpush.bf16.msra.mxu0 %v551
    %645 = vmatmul.bf16.gmra.mxu0 %v399
    %v646 = vpop.f32.mrf.mxu0
    %v647 = vadd.f32 %v634, %v646
    %v648 = vpop.f32.mrf.mxu0
    %649 = vdwg.mxu0
    %v650 = vmax.f32 %v621, 0.0
    %v651 = vmax.f32 %v647, 0.0
    %v652 = vld [vmem:[%s7] sm:$0xff]
    %v653 = vld [vmem:[%s7 + $0x8] sm:$0xff]
    %v654 = vld [vmem:[%s7 + $0x10] sm:$0xff]
    %v655 = vld [vmem:[%s7 + $0x18] sm:$0xff]
    %v656 = vld [vmem:[%s7 + $0x20] sm:$0xff]
    %v657 = vld [vmem:[%s7 + $0x28] sm:$0xff]
    %v658 = vld [vmem:[%s7 + $0x30] sm:$0xff]
    %v659 = vld [vmem:[%s7 + $0x38] sm:$0xff]
    %v660 = vld [vmem:[%s7 + $0x40] sm:$0xff]
    %v661 = vld [vmem:[%s7 + $0x48] sm:$0xff]
    %v662 = vld [vmem:[%s7 + $0x50] sm:$0xff]
    %v663 = vld [vmem:[%s7 + $0x58] sm:$0xff]
    %v664 = vld [vmem:[%s7 + $0x60] sm:$0xff]
    %v665 = vld [vmem:[%s7 + $0x68] sm:$0xff]
    %v666 = vld [vmem:[%s7 + $0x70] sm:$0xff]
    %v667 = vld [vmem:[%s7 + $0x78] sm:$0xff]
    %v668 = vld [vmem:[%s7 + $0x80] sm:$0xff]
    %v669 = vld [vmem:[%s7 + $0x88] sm:$0xff]
    %v670 = vld [vmem:[%s7 + $0x90] sm:$0xff]
    %v671 = vld [vmem:[%s7 + $0x98] sm:$0xff]
    %v672 = vld [vmem:[%s7 + $0xa0] sm:$0xff]
    %v673 = vld [vmem:[%s7 + $0xa8] sm:$0xff]
    %v674 = vld [vmem:[%s7 + $0xb0] sm:$0xff]
    %v675 = vld [vmem:[%s7 + $0xb8] sm:$0xff]
    %v676 = vld [vmem:[%s7 + $0xc0] sm:$0xff]
    %v677 = vld [vmem:[%s7 + $0xc8] sm:$0xff]
    %v678 = vld [vmem:[%s7 + $0xd0] sm:$0xff]
    %v679 = vld [vmem:[%s7 + $0xd8] sm:$0xff]
    %v680 = vld [vmem:[%s7 + $0xe0] sm:$0xff]
    %v681 = vld [vmem:[%s7 + $0xe8] sm:$0xff]
    %v682 = vld [vmem:[%s7 + $0xf0] sm:$0xff]
    %v683 = vld [vmem:[%s7 + $0xf8] sm:$0xff]
    %v684 = vld [vmem:[%s8] sm:$0x1]
    %v686 = vperm.slane %v684, 0
    %688 = vmatpush.msra.mxu0 %v667
    %689 = vmatpush.msra.mxu0 %v666
    %690 = vmatpush.msra.mxu0 %v665
    %691 = vmatpush.msra.mxu0 %v664
    %692 = vmatpush.msra.mxu0 %v663
    %693 = vmatpush.msra.mxu0 %v662
    %694 = vmatpush.msra.mxu0 %v661
    %695 = vmatpush.msra.mxu0 %v660
    %696 = vmatpush.msra.mxu0 %v659
    %697 = vmatpush.msra.mxu0 %v658
    %698 = vmatpush.msra.mxu0 %v657
    %699 = vmatpush.msra.mxu0 %v656
    %700 = vmatpush.msra.mxu0 %v655
    %701 = vmatpush.msra.mxu0 %v654
    %702 = vmatpush.msra.mxu0 %v653
    %703 = vmatpush.msra.mxu0 %v652
    %704 = vmatmul.f32.gmra.mxu0 %v650
    %v705 = vpop.f32.mrf.mxu0
    %v706 = vadd.f32 %v686, %v705
    %707 = vdwg.mxu0
    %708 = vmatpush.msra.mxu0 %v683
    %709 = vmatpush.msra.mxu0 %v682
    %710 = vmatpush.msra.mxu0 %v681
    %711 = vmatpush.msra.mxu0 %v680
    %712 = vmatpush.msra.mxu0 %v679
    %713 = vmatpush.msra.mxu0 %v678
    %714 = vmatpush.msra.mxu0 %v677
    %715 = vmatpush.msra.mxu0 %v676
    %716 = vmatpush.msra.mxu0 %v675
    %717 = vmatpush.msra.mxu0 %v674
    %718 = vmatpush.msra.mxu0 %v673
    %719 = vmatpush.msra.mxu0 %v672
    %720 = vmatpush.msra.mxu0 %v671
    %721 = vmatpush.msra.mxu0 %v670
    %722 = vmatpush.msra.mxu0 %v669
    %723 = vmatpush.msra.mxu0 %v668
    %724 = vmatmul.f32.gmra.mxu0 %v651
    %v725 = vpop.f32.mrf.mxu0
    %v726 = vadd.f32 %v706, %v725
    %727 = vdwg.mxu0
    %v728 = vsel %vm98, %v726, -inf
    %729 = vmax.xlane.f32.xlu0 %v728
    %v730 = vpop.xlane.xlu0 %729
    %v731 = vsub.f32 %v726, %v730
    %v732 = vmul.f32 %v731, 1.442695
    %v733 = vpow.pop %v732
    %v734 = vsel %vm98, %v733, 0.0
    %735 = vadd.xlane.f32.xlu0 %v734
    %v736 = vpop.xlane.xlu0 %735
    %v737 = vrcp.pop %v736
    %v738 = vmul.f32 %v736, %v737
    %v739 = vsub.f32 1.0, %v738
    %v740 = vmul.f32 %v737, %v739
    %v741 = vadd.f32 %v737, %v740
    %vm742 = vweird.f32 %v736
    %vm743 = vweird.f32 %v737
    %vm744 = vmor %vm742, %vm743
    %v745 = vsel %vm744, %v737, %v741
    %v746 = vand.u32 2147483647, %v736
    %vm747 = vcmp.eq.f32.partialorder %v746, 8.507059e+37
    %v748 = vand.u32 %v736, 2147483648
    %v749 = vor.u32 1.1754944e-38, %v748
    %v750 = vsel %vm747, %v749, %v745
    %v751 = vmul.f32 %v733, %v750
    %752 = vst.msk [vmem:[%s9] sm:$0xff] %vm98, %v751
    // Predicated region
    $region54: #{reinforce_forward.1} parent=1 // pred_check
      _
    $region55: #{reinforce_forward.1} parent=1 // pred_check_branch
      %754 = sbr.rel (0) target = $region57
    $region56: #{reinforce_forward.1} parent=1 // pred_region
      _
    $region57: #{reinforce_forward.1} parent=1 // pred_fallthru
      _
    // Predicated region
    $region58: #{reinforce_forward.1} parent=1 // pred_check
      _
    $region59: #{reinforce_forward.1} parent=1 // pred_check_branch
      %756 = sbr.rel (0) target = $region61
    $region60: #{reinforce_forward.1} parent=1 // pred_region
      _
    $region61: #{reinforce_forward.1} parent=1 // pred_fallthru
      _
    %757 = vsyncpa [#allocation3], 1
    %758 = vsyncpa [#allocation5], 1
    %759 = vsyncpa [#allocation8], 1

</llo_original>
